<compile_context>
chip_gen: v6e
topology: v6e:2x2x1
jax: 0.10.0
libtpu: 0.0.40
codegen_flags: <defaults>
</compile_context>

<pallas_src>
import functools
import math

import jax
import jax.numpy as jnp
from jax.experimental import pallas as pl
from jax.experimental.pallas import tpu as pltpu


def _feature_attention_kernel(x_ref, wq_ref, wk_ref, wv_ref,
                              bq_ref, bk_ref, bv_ref,
                              attn_ref, out_ref, kT_s, v_s):
    """One (batch, q-tile) grid step.

    x_ref:    (S, D)   current batch element (batch dim squeezed)
    w*_ref:   (D, D)   projection weights, already transposed (y = x @ w)
                       and already in the MXU feed dtype
    b*_ref:   (1, D)   biases (f32, added post-accumulation)
    attn_ref: (TQ, S)  attention probabilities for this q tile
    out_ref:  (TQ, D)  attended values for this q tile
    kT_s:     (D, S)   K pre-transposed, resident across q tiles of a batch
    v_s:      (S, D)   V, resident across q tiles of a batch
    """
    qi = pl.program_id(1)
    tq = attn_ref.shape[0]
    d = v_s.shape[-1]
    cdtype = wq_ref.dtype  # explicit MXU feed dtype, chosen by the wrapper

    # K / V projections: once per batch element, two separate dots written
    # straight into scratch (no (S,3D) intermediate).  K stored transposed so
    # every scores matmul below is a canonical (M,K)x(K,N) MXU dot.
    @pl.when(qi == 0)
    def _():
        x = x_ref[...].astype(cdtype)
        k = jnp.dot(x, wk_ref[...], preferred_element_type=jnp.float32)
        k = k + bk_ref[...]
        kT_s[...] = k.astype(cdtype).T
        v = jnp.dot(x, wv_ref[...], preferred_element_type=jnp.float32)
        v_s[...] = (v + bv_ref[...]).astype(cdtype)

    # Q for this tile only (no full-S Q scratch); 1/sqrt(D) folded into Q.
    start = pl.multiple_of(qi * tq, tq)
    x_tile = x_ref[pl.ds(start, tq), :].astype(cdtype)
    q = jnp.dot(x_tile, wq_ref[...], preferred_element_type=jnp.float32)
    q = ((q + bq_ref[...]) * jnp.float32(1.0 / math.sqrt(d))).astype(cdtype)

    # scores = q @ k^T  (k already transposed in scratch)
    scores = jnp.dot(q, kT_s[...], preferred_element_type=jnp.float32)

    # numerically-stable softmax over the key axis
    m = jnp.max(scores, axis=-1, keepdims=True)
    e = jnp.exp(scores - m)
    denom = jnp.sum(e, axis=-1, keepdims=True)
    p = e * pl.reciprocal(denom, approx=True)

    # Single cast reused for both the attn store and the attn @ V matmul
    # (when attn dtype == compute dtype, which is the default).
    p_c = p.astype(cdtype)
    attn_ref[...] = p_c if attn_ref.dtype == cdtype else p.astype(attn_ref.dtype)
    out_ref[...] = jnp.dot(p_c, v_s[...],
                           preferred_element_type=jnp.float32
                           ).astype(out_ref.dtype)


def _tpu_defaults():
    """(max query tile, physical VMEM bytes) for the current TPU generation."""
    try:
        kind = jax.devices()[0].device_kind.lower()
    except Exception:  # pragma: no cover - defensive
        kind = ""
    # v5-family MXU is 128x128 -> TQ=256 buys nothing but doubles temps.
    max_tile = 128 if "v5" in kind else 256
    try:
        vmem_cap = int(pltpu.get_tpu_info().vmem_capacity_bytes)
    except Exception:  # pragma: no cover - defensive
        vmem_cap = 64 * 1024 * 1024  # conservative (v7x)
    return max_tile, vmem_cap


def _pick_q_tile(S, max_tile):
    """Largest legal query tile: full S if small, else a multiple of 8 that
    divides S (second-to-last block dim must be a multiple of 8)."""
    if S <= max_tile:
        return S
    for t in range(max_tile - max_tile % 8, 7, -8):
        if S % t == 0:
            return t
    return S


def _vmem_budget(S, D, tq, x_dtype, compute_dtype, attn_dtype):
    """Accurate per-buffer VMEM estimate (double-buffered blocks, resident
    scratch, and per-step f32 temporaries) plus headroom."""
    xb = jnp.dtype(x_dtype).itemsize
    cb = jnp.dtype(compute_dtype).itemsize
    ab = jnp.dtype(attn_dtype).itemsize
    est = (2 * S * D * xb            # x block (double buffered)
           + 2 * 3 * D * D * cb      # wq/wk/wv blocks (constant index_map)
           + 2 * 3 * D * 4           # biases (f32)
           + 2 * tq * S * ab         # attn output block
           + 2 * tq * D * xb         # out block
           + 2 * S * D * cb          # kT + v resident scratch
           + 2 * S * D * 4           # f32 K/V projection temps (qi == 0)
           + tq * D * 4              # f32 Q tile temp
           + 3 * tq * S * 4)         # f32 scores / exp / prob temps
    return est + (2 << 20)


@functools.partial(jax.jit,
                   static_argnames=("q_tile", "compute_dtype", "attn_dtype"))
def feature_attention(x, wq, bq, wk, bk, wv, bv,
                      q_tile=None, compute_dtype=None, attn_dtype=None):
    """x: (B, S, D); w*: (D, D) PyTorch layout (out, in); b*: (D,).

    Returns (attention_weights (B, S, S), attended_values (B, S, D)),
    matching FeatureAttention.forward.

    compute_dtype: explicit MXU feed dtype (default: x.dtype — exact f32 path
    for f32 inputs; pass jnp.bfloat16 for the fast path with f32 accumulation).
    attn_dtype: dtype of the returned attention weights (default: x.dtype);
    bf16 halves the dominant (B,S,S) HBM writeback if consumers tolerate it.
    """
    B, S, D = x.shape
    cdtype = jnp.dtype(compute_dtype) if compute_dtype is not None else jnp.dtype(x.dtype)
    adtype = jnp.dtype(attn_dtype) if attn_dtype is not None else jnp.dtype(x.dtype)

    max_tile, vmem_cap = _tpu_defaults()
    tq = _pick_q_tile(S, max_tile) if q_tile is None else q_tile
    assert S % tq == 0 and (tq == S or tq % 8 == 0), "bad q_tile"

    # PyTorch nn.Linear: y = x @ W.T + b  ->  pre-transpose, cast to the
    # explicit MXU feed dtype; biases stay f32 (added post-accumulation).
    wq_t = wq.T.astype(cdtype)
    wk_t = wk.T.astype(cdtype)
    wv_t = wv.T.astype(cdtype)
    bq2 = bq.reshape(1, D).astype(jnp.float32)
    bk2 = bk.reshape(1, D).astype(jnp.float32)
    bv2 = bv.reshape(1, D).astype(jnp.float32)

    est = _vmem_budget(S, D, tq, x.dtype, cdtype, adtype)
    # Clamp to 7/8 of physical VMEM (56 MiB on v7x, 112 MiB on v5e/v6e).
    vmem_limit = int(min(max(est, 32 * 1024 * 1024), (vmem_cap * 7) // 8))

    xb = jnp.dtype(x.dtype).itemsize
    cost = pl.CostEstimate(
        flops=6 * B * S * D * D + 4 * B * S * S * D,
        transcendentals=B * S * S,
        bytes_accessed=(B * S * D * xb                     # x read
                        + 3 * D * D * jnp.dtype(cdtype).itemsize
                        + 3 * D * 4
                        + B * S * S * jnp.dtype(adtype).itemsize  # attn write
                        + B * S * D * xb))                 # out write

    x_spec = pl.BlockSpec((None, S, D), lambda b, q: (b, 0, 0))
    w_spec = pl.BlockSpec((D, D), lambda b, q: (0, 0))
    b_spec = pl.BlockSpec((1, D), lambda b, q: (0, 0))

    attn, out = pl.pallas_call(
        _feature_attention_kernel,
        out_shape=(jax.ShapeDtypeStruct((B, S, S), adtype),
                   jax.ShapeDtypeStruct((B, S, D), x.dtype)),
        grid_spec=pltpu.PrefetchScalarGridSpec(
            num_scalar_prefetch=0,
            grid=(B, S // tq),
            in_specs=[x_spec, w_spec, w_spec, w_spec, b_spec, b_spec, b_spec],
            out_specs=[pl.BlockSpec((None, tq, S), lambda b, q: (b, q, 0)),
                       pl.BlockSpec((None, tq, D), lambda b, q: (b, q, 0))],
            scratch_shapes=[pltpu.VMEM((D, S), cdtype),   # K^T
                            pltpu.VMEM((S, D), cdtype)],  # V
        ),
        compiler_params=pltpu.CompilerParams(
            # batch axis sharded across TensorCores (v7x megacore); the q-tile
            # axis carries the K/V scratch, so it must stay "arbitrary".
            dimension_semantics=("parallel", "arbitrary"),
            vmem_limit_bytes=vmem_limit),
        cost_estimate=cost,
    )(x, wq_t, wk_t, wv_t, bq2, bk2, bv2)
    return attn, out


def reference(x, wq, bq, wk, bk, wv, bv):
    """Plain-JAX reference mirroring the PyTorch forward."""
    q = x @ wq.T + bq
    k = x @ wk.T + bk
    v = x @ wv.T + bv
    d = x.shape[-1]
    scores = jnp.einsum("bqd,bkd->bqk", q, k) / math.sqrt(d)
    attn = jax.nn.softmax(scores, axis=-1)
    out = jnp.einsum("bqk,bkd->bqd", attn, v)
    return attn, out


if __name__ == "__main__":
    def make_inputs(B, S, D, seed=0):
        key = jax.random.PRNGKey(seed)
        kx, kwq, kbq, kwk, kbk, kwv, kbv = jax.random.split(key, 7)
        bound = 1.0 / math.sqrt(D)
        x = jax.random.normal(kx, (B, S, D), dtype=jnp.float32)
        wq = jax.random.uniform(kwq, (D, D), minval=-bound, maxval=bound)
        bq = jax.random.uniform(kbq, (D,), minval=-bound, maxval=bound)
        wk = jax.random.uniform(kwk, (D, D), minval=-bound, maxval=bound)
        bk = jax.random.uniform(kbk, (D,), minval=-bound, maxval=bound)
        wv = jax.random.uniform(kwv, (D, D), minval=-bound, maxval=bound)
        bv = jax.random.uniform(kbv, (D,), minval=-bound, maxval=bound)
        return x, wq, bq, wk, bk, wv, bv

    # pl.reciprocal(approx=True) makes softmax denominators approximate at the
    # ~1e-4 level; 2e-3 covers it for the exact-f32 MXU path.
    TOL = dict(atol=2e-3, rtol=2e-3)

    # Case 1: module-like small shapes (B=2, S=8, D=32), single q tile.
    args = make_inputs(2, 8, 32, seed=0)
    attn, out = feature_attention(*args)
    jax.block_until_ready((attn, out))
    attn_r, out_r = reference(*args)
    assert jnp.allclose(attn, attn_r, **TOL), float(jnp.max(jnp.abs(attn - attn_r)))
    assert jnp.allclose(out, out_r, **TOL), float(jnp.max(jnp.abs(out - out_r)))

    # Case 2: exercise the query-tiled path (grid = (B, 2), K/V scratch reuse,
    # per-tile Q projection).
    args2 = make_inputs(2, 16, 32, seed=1)
    attn2, out2 = feature_attention(*args2, q_tile=8)
    jax.block_until_ready((attn2, out2))
    attn2_r, out2_r = reference(*args2)
    assert jnp.allclose(attn2, attn2_r, **TOL), float(jnp.max(jnp.abs(attn2 - attn2_r)))
    assert jnp.allclose(out2, out2_r, **TOL), float(jnp.max(jnp.abs(out2 - out2_r)))

    # Case 3: explicit bf16 MXU fast path (bf16 feeds, f32 accumulation);
    # compared loosely against the f32 reference of the same bf16-cast inputs.
    x3 = args[0].astype(jnp.bfloat16)
    wb3 = [a.astype(jnp.bfloat16) for a in args[1:]]
    attn3, out3 = feature_attention(x3, *wb3)
    jax.block_until_ready((attn3, out3))
    attn3_r, out3_r = reference(x3.astype(jnp.float32),
                                *[a.astype(jnp.float32) for a in wb3])
    assert jnp.allclose(attn3.astype(jnp.float32), attn3_r, atol=0.1, rtol=0.1)
    assert jnp.allclose(out3.astype(jnp.float32), out3_r, atol=0.1, rtol=0.1)

    print("KERNEL_OK")
</pallas_src>

<mosaic_0001>
module attributes {stable_mosaic.version = 11 : i64} {
  func.func @_feature_attention_kernel(%arg0: i32, %arg1: i32, %arg2: memref<1x8x32xf32, #tpu.memory_space<vmem>>, %arg3: memref<32x32xf32, #tpu.memory_space<vmem>>, %arg4: memref<32x32xf32, #tpu.memory_space<vmem>>, %arg5: memref<32x32xf32, #tpu.memory_space<vmem>>, %arg6: memref<1x32xf32, #tpu.memory_space<vmem>>, %arg7: memref<1x32xf32, #tpu.memory_space<vmem>>, %arg8: memref<1x32xf32, #tpu.memory_space<vmem>>, %arg9: memref<1x8x8xf32, #tpu.memory_space<vmem>>, %arg10: memref<1x8x32xf32, #tpu.memory_space<vmem>>, %arg11: memref<32x8xf32, #tpu.memory_space<vmem>>, %arg12: memref<8x32xf32, #tpu.memory_space<vmem>>) attributes {dimension_semantics = [#tpu.dimension_semantics<parallel>, #tpu.dimension_semantics<arbitrary>], iteration_bounds = array<i64: 2, 1>, scalar_prefetch = 0 : i64, scratch_operands = 2 : i64, tpu.core_type = #tpu.core_type<tc>, window_params = [{transform_indices = @transform_0, window_bounds = array<i64: 1, 8, 32>}, {pipeline_mode = #tpu.pipeline_mode<synchronous>, transform_indices = @transform_1, window_bounds = array<i64: 32, 32>}, {pipeline_mode = #tpu.pipeline_mode<synchronous>, transform_indices = @transform_2, window_bounds = array<i64: 32, 32>}, {pipeline_mode = #tpu.pipeline_mode<synchronous>, transform_indices = @transform_3, window_bounds = array<i64: 32, 32>}, {pipeline_mode = #tpu.pipeline_mode<synchronous>, transform_indices = @transform_4, window_bounds = array<i64: 1, 32>}, {pipeline_mode = #tpu.pipeline_mode<synchronous>, transform_indices = @transform_5, window_bounds = array<i64: 1, 32>}, {pipeline_mode = #tpu.pipeline_mode<synchronous>, transform_indices = @transform_6, window_bounds = array<i64: 1, 32>}, {transform_indices = @transform_7, window_bounds = array<i64: 1, 8, 8>}, {transform_indices = @transform_8, window_bounds = array<i64: 1, 8, 32>}]} {
    %c0_i32 = arith.constant 0 : i32
    %0 = arith.cmpi eq, %arg1, %c0_i32 : i32
    %1 = arith.extui %0 : i1 to i32
    %c0_i32_0 = arith.constant 0 : i32
    %2 = arith.cmpi ne, %1, %c0_i32_0 : i32
    scf.if %2 {
      %c0_21 = arith.constant 0 : index
      %c0_22 = arith.constant 0 : index
      %c0_23 = arith.constant 0 : index
      %35 = vector.load %arg2[%c0_21, %c0_22, %c0_23] : memref<1x8x32xf32, #tpu.memory_space<vmem>>, vector<1x8x32xf32>
      %36 = vector.shape_cast %35 : vector<1x8x32xf32> to vector<8x32xf32>
      %c0_24 = arith.constant 0 : index
      %c0_25 = arith.constant 0 : index
      %37 = vector.load %arg4[%c0_24, %c0_25] : memref<32x32xf32, #tpu.memory_space<vmem>>, vector<32x32xf32>
      %cst_26 = arith.constant dense<0.000000e+00> : vector<8x32xf32>
      %38 = tpu.matmul %36, %37, %cst_26 {dimension_numbers = #tpu.dot_dimension_numbers<[1], [0], [0], [1], [0, 0, 1, 1], [], []>} : vector<8x32xf32>, vector<32x32xf32>, vector<8x32xf32> -> vector<8x32xf32>
      %c0_27 = arith.constant 0 : index
      %c0_28 = arith.constant 0 : index
      %39 = vector.load %arg7[%c0_27, %c0_28] : memref<1x32xf32, #tpu.memory_space<vmem>>, vector<1x32xf32>
      %40 = vector.broadcast %39 : vector<1x32xf32> to vector<8x32xf32>
      %41 = arith.addf %38, %40 : vector<8x32xf32>
      %42 = tpu.transpose %41, [1, 0] : vector<8x32xf32> -> vector<32x8xf32>
      %c0_29 = arith.constant 0 : index
      %c0_30 = arith.constant 0 : index
      %43 = vector.load %arg11[%c0_29, %c0_30] : memref<32x8xf32, #tpu.memory_space<vmem>>, vector<32x8xf32>
      tpu.vector_store %arg11[%c0_29, %c0_30], %42 {strides = array<i32>} : memref<32x8xf32, #tpu.memory_space<vmem>>, vector<32x8xf32>,
      %c0_31 = arith.constant 0 : index
      %c0_32 = arith.constant 0 : index
      %44 = vector.load %arg5[%c0_31, %c0_32] : memref<32x32xf32, #tpu.memory_space<vmem>>, vector<32x32xf32>
      %cst_33 = arith.constant dense<0.000000e+00> : vector<8x32xf32>
      %45 = tpu.matmul %36, %44, %cst_33 {dimension_numbers = #tpu.dot_dimension_numbers<[1], [0], [0], [1], [0, 0, 1, 1], [], []>} : vector<8x32xf32>, vector<32x32xf32>, vector<8x32xf32> -> vector<8x32xf32>
      %c0_34 = arith.constant 0 : index
      %c0_35 = arith.constant 0 : index
      %46 = vector.load %arg8[%c0_34, %c0_35] : memref<1x32xf32, #tpu.memory_space<vmem>>, vector<1x32xf32>
      %47 = vector.broadcast %46 : vector<1x32xf32> to vector<8x32xf32>
      %48 = arith.addf %45, %47 : vector<8x32xf32>
      %c0_36 = arith.constant 0 : index
      %c0_37 = arith.constant 0 : index
      %49 = vector.load %arg12[%c0_36, %c0_37] : memref<8x32xf32, #tpu.memory_space<vmem>>, vector<8x32xf32>
      tpu.vector_store %arg12[%c0_36, %c0_37], %48 {strides = array<i32>} : memref<8x32xf32, #tpu.memory_space<vmem>>, vector<8x32xf32>,
    } else {
    }
    %c8_i32 = arith.constant 8 : i32
    %3 = arith.muli %arg1, %c8_i32 : i32
    %4 = tpu.assume_multiple %3, 8 : i32
    %c0 = arith.constant 0 : index
    %5 = arith.index_cast %4 : i32 to index
    %c0_1 = arith.constant 0 : index
    %6 = vector.load %arg2[%c0, %5, %c0_1] : memref<1x8x32xf32, #tpu.memory_space<vmem>>, vector<1x8x32xf32>
    %7 = vector.shape_cast %6 : vector<1x8x32xf32> to vector<8x32xf32>
    %c0_2 = arith.constant 0 : index
    %c0_3 = arith.constant 0 : index
    %8 = vector.load %arg3[%c0_2, %c0_3] : memref<32x32xf32, #tpu.memory_space<vmem>>, vector<32x32xf32>
    %cst = arith.constant dense<0.000000e+00> : vector<8x32xf32>
    %9 = tpu.matmul %7, %8, %cst {dimension_numbers = #tpu.dot_dimension_numbers<[1], [0], [0], [1], [0, 0, 1, 1], [], []>} : vector<8x32xf32>, vector<32x32xf32>, vector<8x32xf32> -> vector<8x32xf32>
    %c0_4 = arith.constant 0 : index
    %c0_5 = arith.constant 0 : index
    %10 = vector.load %arg6[%c0_4, %c0_5] : memref<1x32xf32, #tpu.memory_space<vmem>>, vector<1x32xf32>
    %11 = vector.broadcast %10 : vector<1x32xf32> to vector<8x32xf32>
    %12 = arith.addf %9, %11 : vector<8x32xf32>
    %cst_6 = arith.constant 0.176776692 : f32
    %13 = vector.broadcast %cst_6 : f32 to vector<8x32xf32>
    %14 = arith.mulf %12, %13 : vector<8x32xf32>
    %c0_7 = arith.constant 0 : index
    %c0_8 = arith.constant 0 : index
    %15 = vector.load %arg11[%c0_7, %c0_8] : memref<32x8xf32, #tpu.memory_space<vmem>>, vector<32x8xf32>
    %cst_9 = arith.constant dense<0.000000e+00> : vector<8x8xf32>
    %16 = tpu.matmul %14, %15, %cst_9 {dimension_numbers = #tpu.dot_dimension_numbers<[1], [0], [0], [1], [0, 0, 1, 1], [], []>} : vector<8x32xf32>, vector<32x8xf32>, vector<8x8xf32> -> vector<8x8xf32>
    %cst_10 = arith.constant dense<0xFF800000> : vector<8xf32>
    %17 = vector.multi_reduction <maximumf>, %16, %cst_10 [1] : vector<8x8xf32> to vector<8xf32>
    %18 = vector.shape_cast %17 : vector<8xf32> to vector<8x1xf32>
    %19 = vector.broadcast %18 : vector<8x1xf32> to vector<8x8xf32>
    %20 = arith.subf %16, %19 : vector<8x8xf32>
    %21 = math.exp %20 : vector<8x8xf32>
    %cst_11 = arith.constant dense<0.000000e+00> : vector<8xf32>
    %22 = vector.multi_reduction <add>, %21, %cst_11 [1] : vector<8x8xf32> to vector<8xf32>
    %23 = vector.shape_cast %22 : vector<8xf32> to vector<8x1xf32>
    %24 = tpu.reciprocal %23 {approx = true} : vector<8x1xf32> -> vector<8x1xf32>
    %25 = vector.broadcast %24 : vector<8x1xf32> to vector<8x8xf32>
    %26 = arith.mulf %21, %25 : vector<8x8xf32>
    %c0_12 = arith.constant 0 : index
    %c0_13 = arith.constant 0 : index
    %c0_14 = arith.constant 0 : index
    %27 = vector.load %arg9[%c0_12, %c0_13, %c0_14] : memref<1x8x8xf32, #tpu.memory_space<vmem>>, vector<1x8x8xf32>
    %28 = vector.shape_cast %27 : vector<1x8x8xf32> to vector<8x8xf32>
    %29 = vector.shape_cast %26 : vector<8x8xf32> to vector<1x8x8xf32>
    tpu.vector_store %arg9[%c0_12, %c0_13, %c0_14], %29 {strides = array<i32>} : memref<1x8x8xf32, #tpu.memory_space<vmem>>, vector<1x8x8xf32>,
    %c0_15 = arith.constant 0 : index
    %c0_16 = arith.constant 0 : index
    %30 = vector.load %arg12[%c0_15, %c0_16] : memref<8x32xf32, #tpu.memory_space<vmem>>, vector<8x32xf32>
    %cst_17 = arith.constant dense<0.000000e+00> : vector<8x32xf32>
    %31 = tpu.matmul %26, %30, %cst_17 {dimension_numbers = #tpu.dot_dimension_numbers<[1], [0], [0], [1], [0, 0, 1, 1], [], []>} : vector<8x8xf32>, vector<8x32xf32>, vector<8x32xf32> -> vector<8x32xf32>
    %c0_18 = arith.constant 0 : index
    %c0_19 = arith.constant 0 : index
    %c0_20 = arith.constant 0 : index
    %32 = vector.load %arg10[%c0_18, %c0_19, %c0_20] : memref<1x8x32xf32, #tpu.memory_space<vmem>>, vector<1x8x32xf32>
    %33 = vector.shape_cast %32 : vector<1x8x32xf32> to vector<8x32xf32>
    %34 = vector.shape_cast %31 : vector<8x32xf32> to vector<1x8x32xf32>
    tpu.vector_store %arg10[%c0_18, %c0_19, %c0_20], %34 {strides = array<i32>} : memref<1x8x32xf32, #tpu.memory_space<vmem>>, vector<1x8x32xf32>,
    return
  }
  func.func @transform_0(%arg0: i32, %arg1: i32) -> (i32, i32, i32) {
    %c0_i32 = arith.constant 0 : i32
    %c0_i32_0 = arith.constant 0 : i32
    %c0_i32_1 = arith.constant 0 : i32
    return %arg0, %c0_i32, %c0_i32_0 : i32, i32, i32
  }
  func.func @transform_1(%arg0: i32, %arg1: i32) -> (i32, i32) {
    %c0_i32 = arith.constant 0 : i32
    %c0_i32_0 = arith.constant 0 : i32
    %c0_i32_1 = arith.constant 0 : i32
    return %c0_i32, %c0_i32_0 : i32, i32
  }
  func.func @transform_2(%arg0: i32, %arg1: i32) -> (i32, i32) {
    %c0_i32 = arith.constant 0 : i32
    %c0_i32_0 = arith.constant 0 : i32
    %c0_i32_1 = arith.constant 0 : i32
    return %c0_i32, %c0_i32_0 : i32, i32
  }
  func.func @transform_3(%arg0: i32, %arg1: i32) -> (i32, i32) {
    %c0_i32 = arith.constant 0 : i32
    %c0_i32_0 = arith.constant 0 : i32
    %c0_i32_1 = arith.constant 0 : i32
    return %c0_i32, %c0_i32_0 : i32, i32
  }
  func.func @transform_4(%arg0: i32, %arg1: i32) -> (i32, i32) {
    %c0_i32 = arith.constant 0 : i32
    %c0_i32_0 = arith.constant 0 : i32
    %c0_i32_1 = arith.constant 0 : i32
    return %c0_i32, %c0_i32_0 : i32, i32
  }
  func.func @transform_5(%arg0: i32, %arg1: i32) -> (i32, i32) {
    %c0_i32 = arith.constant 0 : i32
    %c0_i32_0 = arith.constant 0 : i32
    %c0_i32_1 = arith.constant 0 : i32
    return %c0_i32, %c0_i32_0 : i32, i32
  }
  func.func @transform_6(%arg0: i32, %arg1: i32) -> (i32, i32) {
    %c0_i32 = arith.constant 0 : i32
    %c0_i32_0 = arith.constant 0 : i32
    %c0_i32_1 = arith.constant 0 : i32
    return %c0_i32, %c0_i32_0 : i32, i32
  }
  func.func @transform_7(%arg0: i32, %arg1: i32) -> (i32, i32, i32) {
    %c0_i32 = arith.constant 0 : i32
    %c0_i32_0 = arith.constant 0 : i32
    return %arg0, %arg1, %c0_i32 : i32, i32, i32
  }
  func.func @transform_8(%arg0: i32, %arg1: i32) -> (i32, i32, i32) {
    %c0_i32 = arith.constant 0 : i32
    %c0_i32_0 = arith.constant 0 : i32
    return %arg0, %arg1, %c0_i32 : i32, i32, i32
  }
}

</mosaic_0001>

<llo_original>
// kernel: feature_attention.1
$region0: #{feature_attention.1}
  #allocation0 [shape = 'u32[]', space=smem, size = 0x4, offset = 0x4, fixed_abs, tag = 'smem constant byte address 0x4 - core index']
  #allocation1 [shape = 'u32[144,128]{1,0:T(1,128)}', space=vmem, size = 0x12000, scoped, tag = 'internal scratch']
  #allocation2 [shape = 'f32[32,8]{1,0:T(8,128)}', space=vmem, size = 0x4000, scoped, tag = 'scratch operand']
  #allocation3 [shape = 'f32[8,32]{1,0:T(8,128)}', space=vmem, size = 0x1000, scoped, tag = 'scratch operand']
  %s0 = inlined_call_operand.vmem [shape: f32[2,8,32], index: 0, kind: input, shape index: {}]
  %s1 = inlined_call_operand.vmem [shape: f32[32,32], index: 1, kind: input, shape index: {}]
  %s2 = inlined_call_operand.vmem [shape: f32[32,32], index: 2, kind: input, shape index: {}]
  %s3 = inlined_call_operand.vmem [shape: f32[32,32], index: 3, kind: input, shape index: {}]
  %s4 = inlined_call_operand.vmem [shape: f32[1,32], index: 4, kind: input, shape index: {}]
  %s5 = inlined_call_operand.vmem [shape: f32[1,32], index: 5, kind: input, shape index: {}]
  %s6 = inlined_call_operand.vmem [shape: f32[1,32], index: 6, kind: input, shape index: {}]
  %s7 = inlined_call_operand.hbm [shape: f32[2,8,8], index: 7, kind: output, shape index: {0}]
  %s8 = inlined_call_operand.hbm [shape: f32[2,8,32], index: 8, kind: output, shape index: {1}]
  %9 = xla_tuple %s7, %s8
  %s10 = sld [smem:[#allocation0]]
  $region73: #{feature_attention.1} parent=0
    _
  %s12 = ssub.s32 1, %s10
  %s13 = scalar_select 0, %s12, %s10
  $region1: #{feature_attention.1} parent=0
    #allocation4 [shape = 'u8[8192]{0}', space=vmem, size = 0x2000, scoped, tag = 'output window, operand 0']
    #allocation5 [shape = 's32[2]{0}', space=sflag, size = 0x8, scoped, tag = 'scoped memory for feature_attention.1']
    #allocation6 [shape = 'u8[8192]{0}', space=vmem, size = 0x2000, scoped, tag = 'output window, operand 1']
    #allocation7 [shape = 's32[2]{0}', space=sflag, size = 0x8, scoped, tag = 'scoped memory for feature_attention.1']
    %14 = vsyncpa [#allocation5], 0
    %s15 = scalar_lea.sflag [#allocation5], 1
    %16 = vsyncpa %s15, 0
    %17 = vsyncpa [#allocation7], 0
    %s18 = scalar_lea.sflag [#allocation7], 1
    %19 = vsyncpa %s18, 0
    loop: start=0, step=1, limit=4
    $region2: #{feature_attention.1} parent=1 // loop_pre_header
      _
    $region3: #{feature_attention.1} parent=1 // loop_header
      %s21 = sphi 0, %s25
      %p22 = scmp.ge.s32.totalorder %s21, 4
      %s28 = sphi 0, %s40
      %s29 = sphi 0, %s36
      %s30 = sphi 0, %s28
      %s31 = sphi 0, %s29
      %s32 = sphi 0, %s30
      %s33 = sphi 0, %s31
      %s43 = sphi 0, %s45
      %s46 = sphi 0, %s43
      %s47 = sphi 0, %s46
      %s63 = sphi 0, %s47
      %s67 = sphi 0, %s67
      %s69 = sphi 0, %s67
      %s70 = sphi 0, %s69
      %s84 = sphi 0, %s70
      %s88 = sphi 0, %s88
      %s90 = sphi 0, %s88
      %s91 = sphi 0, %s90
      %s105 = sphi 0, %s91
      %s109 = sphi 0, %s109
      %s111 = sphi 0, %s109
      %s112 = sphi 0, %s111
      %s126 = sphi 0, %s112
      %s130 = sphi 0, %s130
      %s132 = sphi 0, %s130
      %s133 = sphi 0, %s132
      %s147 = sphi 0, %s133
      %s151 = sphi 0, %s151
      %s153 = sphi 0, %s151
      %s154 = sphi 0, %s153
      %s168 = sphi 0, %s154
      %s172 = sphi 0, %s172
      %s174 = sphi 0, %s172
      %s175 = sphi 0, %s174
      %s189 = sphi 0, %s175
      %s197 = sphi 0, %s199
      %s200 = sphi 0, %s197
      %s201 = sphi 0, %s200
      %s217 = sphi 0, %s201
      %s225 = sphi 0, %s227
      %s228 = sphi 0, %s225
      %s229 = sphi 0, %s228
      %s245 = sphi 0, %s229
    $region4: #{feature_attention.1} parent=1 // loop_header_branch
      %24 = sbr.rel (%p22) target = $region8
    $region5: #{feature_attention.1} parent=1 // loop_body
      %s26 = ssub.s32 %s21, 1
      %s27 = ssub.s32 %s21, 2
      %s34 = sadd.s32 1, %s29
      %p35 = scmp.ge.s32.totalorder %s34, 1
      %s36 = scalar_select %p35, 0, %s34
      %s37 = sadd.s32 1, %s28
      %s38 = scalar_select %p35, %s37, %s28
      %p39 = scmp.ge.s32.totalorder %s38, 2
      %s40 = scalar_select %p39, 0, %s38
      %s41 = ssub.s32 %s28, %s40
      %p42 = scmp.eq.s32.totalorder %s41, 0
      %s44 = sadd.s32 %s43, 1
      %s45 = scalar_select %p42, %s43, %s44
      %p48 = pneg %p42
      %p49 = scmp.eq.s32.totalorder %s21, 1
      %p50 = por %p48, %p49
      %p51 = scmp.ne.s32.totalorder %s43, %s46
      %p52 = scmp.eq.s32.totalorder %s21, 0
      %p53 = por %p51, %p52
      %p54 = scmp.ne.s32.totalorder %s43, %s46
      %p55 = scmp.eq.s32.totalorder %s26, 1
      %p56 = por %p54, %p55
      %p57 = scmp.ne.s32.totalorder %s46, %s47
      %p58 = scmp.eq.s32.totalorder %s26, 0
      %p59 = por %p57, %p58
      %p60 = scmp.ne.s32.totalorder %s46, %s47
      %p61 = scmp.eq.s32.totalorder %s27, 1
      %p62 = por %p60, %p61
      %p64 = scmp.ne.s32.totalorder %s47, %s63
      %p65 = scmp.eq.s32.totalorder %s27, 0
      %p66 = por %p64, %p65
      %s68 = sadd.s32 %s67, 1
      %p71 = scmp.eq.s32.totalorder %s21, 1
      %p72 = scmp.ne.s32.totalorder %s67, %s69
      %p73 = scmp.eq.s32.totalorder %s21, 0
      %p74 = por %p72, %p73
      %p75 = scmp.ne.s32.totalorder %s67, %s69
      %p76 = scmp.eq.s32.totalorder %s26, 1
      %p77 = por %p75, %p76
      %p78 = scmp.ne.s32.totalorder %s69, %s70
      %p79 = scmp.eq.s32.totalorder %s26, 0
      %p80 = por %p78, %p79
      %p81 = scmp.ne.s32.totalorder %s69, %s70
      %p82 = scmp.eq.s32.totalorder %s27, 1
      %p83 = por %p81, %p82
      %p85 = scmp.ne.s32.totalorder %s70, %s84
      %p86 = scmp.eq.s32.totalorder %s27, 0
      %p87 = por %p85, %p86
      %s89 = sadd.s32 %s88, 1
      %p92 = scmp.eq.s32.totalorder %s21, 1
      %p93 = scmp.ne.s32.totalorder %s88, %s90
      %p94 = scmp.eq.s32.totalorder %s21, 0
      %p95 = por %p93, %p94
      %p96 = scmp.ne.s32.totalorder %s88, %s90
      %p97 = scmp.eq.s32.totalorder %s26, 1
      %p98 = por %p96, %p97
      %p99 = scmp.ne.s32.totalorder %s90, %s91
      %p100 = scmp.eq.s32.totalorder %s26, 0
      %p101 = por %p99, %p100
      %p102 = scmp.ne.s32.totalorder %s90, %s91
      %p103 = scmp.eq.s32.totalorder %s27, 1
      %p104 = por %p102, %p103
      %p106 = scmp.ne.s32.totalorder %s91, %s105
      %p107 = scmp.eq.s32.totalorder %s27, 0
      %p108 = por %p106, %p107
      %s110 = sadd.s32 %s109, 1
      %p113 = scmp.eq.s32.totalorder %s21, 1
      %p114 = scmp.ne.s32.totalorder %s109, %s111
      %p115 = scmp.eq.s32.totalorder %s21, 0
      %p116 = por %p114, %p115
      %p117 = scmp.ne.s32.totalorder %s109, %s111
      %p118 = scmp.eq.s32.totalorder %s26, 1
      %p119 = por %p117, %p118
      %p120 = scmp.ne.s32.totalorder %s111, %s112
      %p121 = scmp.eq.s32.totalorder %s26, 0
      %p122 = por %p120, %p121
      %p123 = scmp.ne.s32.totalorder %s111, %s112
      %p124 = scmp.eq.s32.totalorder %s27, 1
      %p125 = por %p123, %p124
      %p127 = scmp.ne.s32.totalorder %s112, %s126
      %p128 = scmp.eq.s32.totalorder %s27, 0
      %p129 = por %p127, %p128
      %s131 = sadd.s32 %s130, 1
      %p134 = scmp.eq.s32.totalorder %s21, 1
      %p135 = scmp.ne.s32.totalorder %s130, %s132
      %p136 = scmp.eq.s32.totalorder %s21, 0
      %p137 = por %p135, %p136
      %p138 = scmp.ne.s32.totalorder %s130, %s132
      %p139 = scmp.eq.s32.totalorder %s26, 1
      %p140 = por %p138, %p139
      %p141 = scmp.ne.s32.totalorder %s132, %s133
      %p142 = scmp.eq.s32.totalorder %s26, 0
      %p143 = por %p141, %p142
      %p144 = scmp.ne.s32.totalorder %s132, %s133
      %p145 = scmp.eq.s32.totalorder %s27, 1
      %p146 = por %p144, %p145
      %p148 = scmp.ne.s32.totalorder %s133, %s147
      %p149 = scmp.eq.s32.totalorder %s27, 0
      %p150 = por %p148, %p149
      %s152 = sadd.s32 %s151, 1
      %p155 = scmp.eq.s32.totalorder %s21, 1
      %p156 = scmp.ne.s32.totalorder %s151, %s153
      %p157 = scmp.eq.s32.totalorder %s21, 0
      %p158 = por %p156, %p157
      %p159 = scmp.ne.s32.totalorder %s151, %s153
      %p160 = scmp.eq.s32.totalorder %s26, 1
      %p161 = por %p159, %p160
      %p162 = scmp.ne.s32.totalorder %s153, %s154
      %p163 = scmp.eq.s32.totalorder %s26, 0
      %p164 = por %p162, %p163
      %p165 = scmp.ne.s32.totalorder %s153, %s154
      %p166 = scmp.eq.s32.totalorder %s27, 1
      %p167 = por %p165, %p166
      %p169 = scmp.ne.s32.totalorder %s154, %s168
      %p170 = scmp.eq.s32.totalorder %s27, 0
      %p171 = por %p169, %p170
      %s173 = sadd.s32 %s172, 1
      %p176 = scmp.eq.s32.totalorder %s21, 1
      %p177 = scmp.ne.s32.totalorder %s172, %s174
      %p178 = scmp.eq.s32.totalorder %s21, 0
      %p179 = por %p177, %p178
      %p180 = scmp.ne.s32.totalorder %s172, %s174
      %p181 = scmp.eq.s32.totalorder %s26, 1
      %p182 = por %p180, %p181
      %p183 = scmp.ne.s32.totalorder %s174, %s175
      %p184 = scmp.eq.s32.totalorder %s26, 0
      %p185 = por %p183, %p184
      %p186 = scmp.ne.s32.totalorder %s174, %s175
      %p187 = scmp.eq.s32.totalorder %s27, 1
      %p188 = por %p186, %p187
      %p190 = scmp.ne.s32.totalorder %s175, %s189
      %p191 = scmp.eq.s32.totalorder %s27, 0
      %p192 = por %p190, %p191
      %s193 = ssub.s32 %s28, %s40
      %s194 = ssub.s32 %s29, %s36
      %s195 = sor.u32 %s193, %s194
      %p196 = scmp.eq.s32.totalorder %s195, 0
      %s198 = sadd.s32 %s197, 1
      %s199 = scalar_select %p196, %s197, %s198
      %p202 = pneg %p196
      %p203 = scmp.eq.s32.totalorder %s21, 1
      %p204 = por %p202, %p203
      %p205 = scmp.ne.s32.totalorder %s197, %s200
      %p206 = scmp.eq.s32.totalorder %s21, 0
      %p207 = por %p205, %p206
      %p208 = scmp.ne.s32.totalorder %s197, %s200
      %p209 = scmp.eq.s32.totalorder %s26, 1
      %p210 = por %p208, %p209
      %p211 = scmp.ne.s32.totalorder %s200, %s201
      %p212 = scmp.eq.s32.totalorder %s26, 0
      %p213 = por %p211, %p212
      %p214 = scmp.ne.s32.totalorder %s200, %s201
      %p215 = scmp.eq.s32.totalorder %s27, 1
      %p216 = por %p214, %p215
      %p218 = scmp.ne.s32.totalorder %s201, %s217
      %p219 = scmp.eq.s32.totalorder %s27, 0
      %p220 = por %p218, %p219
      %s221 = ssub.s32 %s28, %s40
      %s222 = ssub.s32 %s29, %s36
      %s223 = sor.u32 %s221, %s222
      %p224 = scmp.eq.s32.totalorder %s223, 0
      %s226 = sadd.s32 %s225, 1
      %s227 = scalar_select %p224, %s225, %s226
      %p230 = pneg %p224
      %p231 = scmp.eq.s32.totalorder %s21, 1
      %p232 = por %p230, %p231
      %p233 = scmp.ne.s32.totalorder %s225, %s228
      %p234 = scmp.eq.s32.totalorder %s21, 0
      %p235 = por %p233, %p234
      %p236 = scmp.ne.s32.totalorder %s225, %s228
      %p237 = scmp.eq.s32.totalorder %s26, 1
      %p238 = por %p236, %p237
      %p239 = scmp.ne.s32.totalorder %s228, %s229
      %p240 = scmp.eq.s32.totalorder %s26, 0
      %p241 = por %p239, %p240
      %p242 = scmp.ne.s32.totalorder %s228, %s229
      %p243 = scmp.eq.s32.totalorder %s27, 1
      %p244 = por %p242, %p243
      %p246 = scmp.ne.s32.totalorder %s229, %s245
      %p247 = scmp.eq.s32.totalorder %s27, 0
      %p248 = por %p246, %p247
      %p249 = scmp.le.s32.totalorder 1, %s21
      %p250 = scmp.lt.s32.totalorder %s21, 3
      %p251 = pnand %p249, %p250
      %p252 = pneg %p251
      // Predicated region
      $region9: #{feature_attention.1} parent=5 // pred_check
        _
      $region10: #{feature_attention.1} parent=5 // pred_check_branch
        %254 = sbr.rel (%p251) target = $region12
      $region11: #{feature_attention.1} parent=5 // pred_region
        %s255 = ssub.s32 %s21, 1
        // Predicated region
        $region13: #{feature_attention.1} parent=11 // pred_check
          %p256 = pneg %p80
        $region14: #{feature_attention.1} parent=11 // pred_check_branch
          %258 = sbr.rel (%p256) target = $region16
        $region15: #{feature_attention.1} parent=11 // pred_region
          _
        $region16: #{feature_attention.1} parent=11 // pred_fallthru
          _
        // Predicated region
        $region17: #{feature_attention.1} parent=11 // pred_check
          %p259 = pneg %p101
        $region18: #{feature_attention.1} parent=11 // pred_check_branch
          %261 = sbr.rel (%p259) target = $region20
        $region19: #{feature_attention.1} parent=11 // pred_region
          _
        $region20: #{feature_attention.1} parent=11 // pred_fallthru
          _
        // Predicated region
        $region21: #{feature_attention.1} parent=11 // pred_check
          %p262 = pneg %p122
        $region22: #{feature_attention.1} parent=11 // pred_check_branch
          %264 = sbr.rel (%p262) target = $region24
        $region23: #{feature_attention.1} parent=11 // pred_region
          _
        $region24: #{feature_attention.1} parent=11 // pred_fallthru
          _
        // Predicated region
        $region25: #{feature_attention.1} parent=11 // pred_check
          %p265 = pneg %p143
        $region26: #{feature_attention.1} parent=11 // pred_check_branch
          %267 = sbr.rel (%p265) target = $region28
        $region27: #{feature_attention.1} parent=11 // pred_region
          _
        $region28: #{feature_attention.1} parent=11 // pred_fallthru
          _
        // Predicated region
        $region29: #{feature_attention.1} parent=11 // pred_check
          %p268 = pneg %p164
        $region30: #{feature_attention.1} parent=11 // pred_check_branch
          %270 = sbr.rel (%p268) target = $region32
        $region31: #{feature_attention.1} parent=11 // pred_region
          _
        $region32: #{feature_attention.1} parent=11 // pred_fallthru
          _
        // Predicated region
        $region33: #{feature_attention.1} parent=11 // pred_check
          %p271 = pneg %p185
        $region34: #{feature_attention.1} parent=11 // pred_check_branch
          %273 = sbr.rel (%p271) target = $region36
        $region35: #{feature_attention.1} parent=11 // pred_region
          _
        $region36: #{feature_attention.1} parent=11 // pred_fallthru
          _
      $region12: #{feature_attention.1} parent=5 // pred_fallthru
        _
      %p274 = scmp.lt.s32.totalorder %s21, 2
      // Predicated region
      $region37: #{feature_attention.1} parent=5 // pred_check
        %p275 = pneg %p274
      $region38: #{feature_attention.1} parent=5 // pred_check_branch
        %277 = sbr.rel (%p275) target = $region40
      $region39: #{feature_attention.1} parent=5 // pred_region
        // Predicated region
        $region41: #{feature_attention.1} parent=39 // pred_check
          %p278 = pneg %p53
        $region42: #{feature_attention.1} parent=39 // pred_check_branch
          %280 = sbr.rel (%p278) target = $region44
        $region43: #{feature_attention.1} parent=39 // pred_region
          %p281 = scmp.lt.s32.totalorder %s28, 1
          %s282 = scalar_select %p281, %s28, 1
          %s283 = smul.addr %s282, 8
          %s284 = scalar_lea.vmem %s0, %s283
        $region44: #{feature_attention.1} parent=39 // pred_fallthru
          _
      $region40: #{feature_attention.1} parent=5 // pred_fallthru
        _
      %p285 = scmp.le.s32.totalorder 1, %s21
      %p286 = scmp.lt.s32.totalorder %s21, 3
      %p287 = pnand %p285, %p286
      %p288 = pneg %p287
      // Predicated region
      $region45: #{feature_attention.1} parent=5 // pred_check
        _
      $region46: #{feature_attention.1} parent=5 // pred_check_branch
        %290 = sbr.rel (%p287) target = $region48
      $region47: #{feature_attention.1} parent=5 // pred_region
        %s291 = ssub.s32 %s21, 1
        %p292 = scmp.lt.s32.totalorder %s30, 1
        %s293 = scalar_select %p292, %s30, 1
        %s294 = smul.addr %s293, 8
        %s295 = scalar_lea.vmem %s0, %s294
        %p296 = pneg %p59
        %p297 = pneg %p56
        %p298 = pneg %p80
        %p299 = pneg %p77
        %p300 = pneg %p101
        %p301 = pneg %p98
        %p302 = pneg %p122
        %p303 = pneg %p119
        %p304 = pneg %p143
        %p305 = pneg %p140
        %p306 = pneg %p164
        %p307 = pneg %p161
        %p308 = pneg %p185
        %p309 = pneg %p182
        %p310 = pneg %p213
        %p311 = pneg %p210
        %s312 = sand.u32 %s200, 1
        %s313 = scalar_lea.sflag [#allocation5], %s312
        %s314 = sand.u32 %s200, 1
        %s315 = smul.addr %s314, 8
        %s316 = scalar_lea.vmem [#allocation4], %s315
        %p317 = pneg %p241
        %p318 = pneg %p238
        %s319 = sand.u32 %s228, 1
        %s320 = scalar_lea.sflag [#allocation7], %s319
        %s321 = sand.u32 %s228, 1
        %s322 = smul.addr %s321, 8
        %s323 = scalar_lea.vmem [#allocation6], %s322
        %p324 = scmp.lt.s32.totalorder %s30, 1
        %s325 = scalar_select %p324, %s30, 1
        %s326 = smul.addr %s325, 8
        %s327 = scalar_lea.vmem %s0, %s326
        %p328 = scmp.eq.s32.totalorder %s31, 0
        // Predicated region
        $region49: #{feature_attention.1} parent=47 // pred_check
          %p329 = pneg %p328
        $region50: #{feature_attention.1} parent=47 // pred_check_branch
          %331 = sbr.rel (%p329) target = $region52
        $region51: #{feature_attention.1} parent=47 // pred_region
          %v332 = vld [vmem:[%s327] sm:$0xff]
          %v333 = vld [vmem:[%s2] sm:$0xff]
          %v334 = vld [vmem:[%s2 + $0x8] sm:$0xff]
          %v335 = vld [vmem:[%s2 + $0x10] sm:$0xff]
          %v336 = vld [vmem:[%s2 + $0x18] sm:$0xff]
          %v337 = vld [vmem:[%s5] sm:$0x1]
          %v339 = vlaneseq
          %v340 = vshrl.u32 %v339, 7
          %v341 = vsub.s32 0, %v340
          %v342 = vrot.slane %v337, %v341
          %vm344 = vcmask 261120
          %v346 = vsel %vm344, %v332, 0
          %348 = vmatprep.subr.mxu0 0.0
          %349 = vmatpush1.msra.mxu0 0.0
          %350 = vmatprep.subr.mxu0 0.0
          %351 = vmatpush1.msra.mxu0 0.0
          %352 = vmatprep.subr.mxu0 0.0
          %353 = vmatpush1.msra.mxu0 0.0
          %354 = vmatprep.subr.mxu0 0.0
          %355 = vmatpush1.msra.mxu0 0.0
          %356 = vmatprep.subr.mxu0 0.0
          %357 = vmatpush1.msra.mxu0 0.0
          %358 = vmatprep.subr.mxu0 0.0
          %359 = vmatpush1.msra.mxu0 0.0
          %360 = vmatprep.subr.mxu0 0.0
          %361 = vmatpush1.msra.mxu0 0.0
          %362 = vmatprep.subr.mxu0 0.0
          %363 = vmatpush1.msra.mxu0 0.0
          %364 = vmatprep.subr.mxu0 0.0
          %365 = vmatpush1.msra.mxu0 0.0
          %366 = vmatprep.subr.mxu0 0.0
          %367 = vmatpush1.msra.mxu0 0.0
          %368 = vmatprep.subr.mxu0 0.0
          %369 = vmatpush1.msra.mxu0 0.0
          %370 = vmatprep.subr.mxu0 0.0
          %371 = vmatpush1.msra.mxu0 0.0
          %372 = vmatprep.subr.mxu0 0.0
          %373 = vmatpush1.msra.mxu0 %v336
          %374 = vmatprep.subr.mxu0 0.0
          %375 = vmatpush1.msra.mxu0 %v335
          %376 = vmatprep.subr.mxu0 0.0
          %377 = vmatpush1.msra.mxu0 %v334
          %378 = vmatprep.subr.mxu0 0.0
          %379 = vmatpush1.msra.mxu0 %v333
          %380 = vmatprep.subr.mxu0 0.0
          %381 = vmatpush2.msra.mxu0 0.0
          %382 = vmatprep.subr.mxu0 0.0
          %383 = vmatpush2.msra.mxu0 0.0
          %384 = vmatprep.subr.mxu0 0.0
          %385 = vmatpush2.msra.mxu0 0.0
          %386 = vmatprep.subr.mxu0 0.0
          %387 = vmatpush2.msra.mxu0 0.0
          %388 = vmatprep.subr.mxu0 0.0
          %389 = vmatpush2.msra.mxu0 0.0
          %390 = vmatprep.subr.mxu0 0.0
          %391 = vmatpush2.msra.mxu0 0.0
          %392 = vmatprep.subr.mxu0 0.0
          %393 = vmatpush2.msra.mxu0 0.0
          %394 = vmatprep.subr.mxu0 0.0
          %395 = vmatpush2.msra.mxu0 0.0
          %396 = vmatprep.subr.mxu0 0.0
          %397 = vmatpush2.msra.mxu0 0.0
          %398 = vmatprep.subr.mxu0 0.0
          %399 = vmatpush2.msra.mxu0 0.0
          %400 = vmatprep.subr.mxu0 0.0
          %401 = vmatpush2.msra.mxu0 0.0
          %402 = vmatprep.subr.mxu0 0.0
          %403 = vmatpush2.msra.mxu0 0.0
          %404 = vmatprep.subr.mxu0 0.0
          %405 = vmatpush2.msra.mxu0 0.0
          %406 = vmatprep.subr.mxu0 0.0
          %407 = vmatpush2.msra.mxu0 0.0
          %408 = vmatprep.subr.mxu0 0.0
          %409 = vmatpush2.msra.mxu0 0.0
          %410 = vmatprep.subr.mxu0 0.0
          %411 = vmatpush2.msra.mxu0 0.0
          %412 = vmatprep.mubr.f32.mxu0 0.0
          %413 = vmatmul.mubr.f32.gmra.mxu0 %v346
          %v414 = vpop.f32.mrf.mxu0
          %v415 = vadd.f32 %v342, %v414
          %v416 = vpop.f32.mrf.mxu0
          %417 = vdwg.mxu0
          %418 = vxpose.xlu0.b32.start [1/16] %v415, 128
          %419 = vxpose.xlu0.b32.cont [2/16] 0.0, 128
          %420 = vxpose.xlu0.b32.cont [3/16] 0.0, 128
          %421 = vxpose.xlu0.b32.cont [4/16] 0.0, 128
          %422 = vxpose.xlu0.b32.cont [5/16] 0.0, 128
          %423 = vxpose.xlu0.b32.cont [6/16] 0.0, 128
          %424 = vxpose.xlu0.b32.cont [7/16] 0.0, 128
          %425 = vxpose.xlu0.b32.cont [8/16] 0.0, 128
          %426 = vxpose.xlu0.b32.cont [9/16] 0.0, 128
          %427 = vxpose.xlu0.b32.cont [10/16] 0.0, 128
          %428 = vxpose.xlu0.b32.cont [11/16] 0.0, 128
          %429 = vxpose.xlu0.b32.cont [12/16] 0.0, 128
          %430 = vxpose.xlu0.b32.cont [13/16] 0.0, 128
          %431 = vxpose.xlu0.b32.cont [14/16] 0.0, 128
          %432 = vxpose.xlu0.b32.cont [15/16] 0.0, 128
          %433 = vxpose.xlu0.b32.end [16/16] 0.0, 128
          %v434 = vpop.trf.xlu0
          %v435 = vpop.trf.xlu0
          %v436 = vpop.trf.xlu0
          %v437 = vpop.trf.xlu0
          %v438 = vpop.trf.xlu0
          %v439 = vpop.trf.xlu0
          %v440 = vpop.trf.xlu0
          %v441 = vpop.trf.xlu0
          %v442 = vpop.trf.xlu0
          %v443 = vpop.trf.xlu0
          %v444 = vpop.trf.xlu0
          %v445 = vpop.trf.xlu0
          %v446 = vpop.trf.xlu0
          %v447 = vpop.trf.xlu0
          %v448 = vpop.trf.xlu0
          %v449 = vpop.trf.xlu0
          %vm450 = vcmask 64512
          %451 = vst.msk [vmem:[#allocation2] sm:$0xff] %vm450, %v434
          %452 = vst.msk [vmem:[#allocation2 + $0x8] sm:$0xff] %vm450, %v435
          %453 = vst.msk [vmem:[#allocation2 + $0x10] sm:$0xff] %vm450, %v436
          %454 = vst.msk [vmem:[#allocation2 + $0x18] sm:$0xff] %vm450, %v437
          %v455 = vld [vmem:[%s3] sm:$0xff]
          %v456 = vld [vmem:[%s3 + $0x8] sm:$0xff]
          %v457 = vld [vmem:[%s3 + $0x10] sm:$0xff]
          %v458 = vld [vmem:[%s3 + $0x18] sm:$0xff]
          %v459 = vld [vmem:[%s6] sm:$0x1]
          %v461 = vlaneseq
          %v462 = vshrl.u32 %v461, 7
          %v463 = vsub.s32 0, %v462
          %v464 = vrot.slane %v459, %v463
          %466 = vmatprep.subr.mxu0 0.0
          %467 = vmatpush1.msra.mxu0 0.0
          %468 = vmatprep.subr.mxu0 0.0
          %469 = vmatpush1.msra.mxu0 0.0
          %470 = vmatprep.subr.mxu0 0.0
          %471 = vmatpush1.msra.mxu0 0.0
          %472 = vmatprep.subr.mxu0 0.0
          %473 = vmatpush1.msra.mxu0 0.0
          %474 = vmatprep.subr.mxu0 0.0
          %475 = vmatpush1.msra.mxu0 0.0
          %476 = vmatprep.subr.mxu0 0.0
          %477 = vmatpush1.msra.mxu0 0.0
          %478 = vmatprep.subr.mxu0 0.0
          %479 = vmatpush1.msra.mxu0 0.0
          %480 = vmatprep.subr.mxu0 0.0
          %481 = vmatpush1.msra.mxu0 0.0
          %482 = vmatprep.subr.mxu0 0.0
          %483 = vmatpush1.msra.mxu0 0.0
          %484 = vmatprep.subr.mxu0 0.0
          %485 = vmatpush1.msra.mxu0 0.0
          %486 = vmatprep.subr.mxu0 0.0
          %487 = vmatpush1.msra.mxu0 0.0
          %488 = vmatprep.subr.mxu0 0.0
          %489 = vmatpush1.msra.mxu0 0.0
          %490 = vmatprep.subr.mxu0 0.0
          %491 = vmatpush1.msra.mxu0 %v458
          %492 = vmatprep.subr.mxu0 0.0
          %493 = vmatpush1.msra.mxu0 %v457
          %494 = vmatprep.subr.mxu0 0.0
          %495 = vmatpush1.msra.mxu0 %v456
          %496 = vmatprep.subr.mxu0 0.0
          %497 = vmatpush1.msra.mxu0 %v455
          %498 = vmatprep.subr.mxu0 0.0
          %499 = vmatpush2.msra.mxu0 0.0
          %500 = vmatprep.subr.mxu0 0.0
          %501 = vmatpush2.msra.mxu0 0.0
          %502 = vmatprep.subr.mxu0 0.0
          %503 = vmatpush2.msra.mxu0 0.0
          %504 = vmatprep.subr.mxu0 0.0
          %505 = vmatpush2.msra.mxu0 0.0
          %506 = vmatprep.subr.mxu0 0.0
          %507 = vmatpush2.msra.mxu0 0.0
          %508 = vmatprep.subr.mxu0 0.0
          %509 = vmatpush2.msra.mxu0 0.0
          %510 = vmatprep.subr.mxu0 0.0
          %511 = vmatpush2.msra.mxu0 0.0
          %512 = vmatprep.subr.mxu0 0.0
          %513 = vmatpush2.msra.mxu0 0.0
          %514 = vmatprep.subr.mxu0 0.0
          %515 = vmatpush2.msra.mxu0 0.0
          %516 = vmatprep.subr.mxu0 0.0
          %517 = vmatpush2.msra.mxu0 0.0
          %518 = vmatprep.subr.mxu0 0.0
          %519 = vmatpush2.msra.mxu0 0.0
          %520 = vmatprep.subr.mxu0 0.0
          %521 = vmatpush2.msra.mxu0 0.0
          %522 = vmatprep.subr.mxu0 0.0
          %523 = vmatpush2.msra.mxu0 0.0
          %524 = vmatprep.subr.mxu0 0.0
          %525 = vmatpush2.msra.mxu0 0.0
          %526 = vmatprep.subr.mxu0 0.0
          %527 = vmatpush2.msra.mxu0 0.0
          %528 = vmatprep.subr.mxu0 0.0
          %529 = vmatpush2.msra.mxu0 0.0
          %530 = vmatprep.mubr.f32.mxu0 0.0
          %531 = vmatmul.mubr.f32.gmra.mxu0 %v346
          %v532 = vpop.f32.mrf.mxu0
          %v533 = vadd.f32 %v464, %v532
          %v534 = vpop.f32.mrf.mxu0
          %535 = vdwg.mxu0
          %536 = vst.msk [vmem:[#allocation3] sm:$0xff] %vm344, %v533
        $region52: #{feature_attention.1} parent=47 // pred_fallthru
          _
        %s537 = smul.u32 %s31, 8
        %s538 = scalar_lea.vmem %s327, %s537
        %v539 = vld [vmem:[%s538] sm:$0xff]
        %v540 = vld [vmem:[%s1] sm:$0xff]
        %v541 = vld [vmem:[%s1 + $0x8] sm:$0xff]
        %v542 = vld [vmem:[%s1 + $0x10] sm:$0xff]
        %v543 = vld [vmem:[%s1 + $0x18] sm:$0xff]
        %v544 = vld [vmem:[%s4] sm:$0x1]
        %v546 = vlaneseq
        %v547 = vshrl.u32 %v546, 7
        %v548 = vsub.s32 0, %v547
        %v549 = vrot.slane %v544, %v548
        %vm551 = vcmask 261120
        %v553 = vsel %vm551, %v539, 0
        %555 = vmatprep.subr.mxu0 0.0
        %556 = vmatpush1.msra.mxu0 0.0
        %557 = vmatprep.subr.mxu0 0.0
        %558 = vmatpush1.msra.mxu0 0.0
        %559 = vmatprep.subr.mxu0 0.0
        %560 = vmatpush1.msra.mxu0 0.0
        %561 = vmatprep.subr.mxu0 0.0
        %562 = vmatpush1.msra.mxu0 0.0
        %563 = vmatprep.subr.mxu0 0.0
        %564 = vmatpush1.msra.mxu0 0.0
        %565 = vmatprep.subr.mxu0 0.0
        %566 = vmatpush1.msra.mxu0 0.0
        %567 = vmatprep.subr.mxu0 0.0
        %568 = vmatpush1.msra.mxu0 0.0
        %569 = vmatprep.subr.mxu0 0.0
        %570 = vmatpush1.msra.mxu0 0.0
        %571 = vmatprep.subr.mxu0 0.0
        %572 = vmatpush1.msra.mxu0 0.0
        %573 = vmatprep.subr.mxu0 0.0
        %574 = vmatpush1.msra.mxu0 0.0
        %575 = vmatprep.subr.mxu0 0.0
        %576 = vmatpush1.msra.mxu0 0.0
        %577 = vmatprep.subr.mxu0 0.0
        %578 = vmatpush1.msra.mxu0 0.0
        %579 = vmatprep.subr.mxu0 0.0
        %580 = vmatpush1.msra.mxu0 %v543
        %581 = vmatprep.subr.mxu0 0.0
        %582 = vmatpush1.msra.mxu0 %v542
        %583 = vmatprep.subr.mxu0 0.0
        %584 = vmatpush1.msra.mxu0 %v541
        %585 = vmatprep.subr.mxu0 0.0
        %586 = vmatpush1.msra.mxu0 %v540
        %587 = vmatprep.subr.mxu0 0.0
        %588 = vmatpush2.msra.mxu0 0.0
        %589 = vmatprep.subr.mxu0 0.0
        %590 = vmatpush2.msra.mxu0 0.0
        %591 = vmatprep.subr.mxu0 0.0
        %592 = vmatpush2.msra.mxu0 0.0
        %593 = vmatprep.subr.mxu0 0.0
        %594 = vmatpush2.msra.mxu0 0.0
        %595 = vmatprep.subr.mxu0 0.0
        %596 = vmatpush2.msra.mxu0 0.0
        %597 = vmatprep.subr.mxu0 0.0
        %598 = vmatpush2.msra.mxu0 0.0
        %599 = vmatprep.subr.mxu0 0.0
        %600 = vmatpush2.msra.mxu0 0.0
        %601 = vmatprep.subr.mxu0 0.0
        %602 = vmatpush2.msra.mxu0 0.0
        %603 = vmatprep.subr.mxu0 0.0
        %604 = vmatpush2.msra.mxu0 0.0
        %605 = vmatprep.subr.mxu0 0.0
        %606 = vmatpush2.msra.mxu0 0.0
        %607 = vmatprep.subr.mxu0 0.0
        %608 = vmatpush2.msra.mxu0 0.0
        %609 = vmatprep.subr.mxu0 0.0
        %610 = vmatpush2.msra.mxu0 0.0
        %611 = vmatprep.subr.mxu0 0.0
        %612 = vmatpush2.msra.mxu0 0.0
        %613 = vmatprep.subr.mxu0 0.0
        %614 = vmatpush2.msra.mxu0 0.0
        %615 = vmatprep.subr.mxu0 0.0
        %616 = vmatpush2.msra.mxu0 0.0
        %617 = vmatprep.subr.mxu0 0.0
        %618 = vmatpush2.msra.mxu0 0.0
        %619 = vmatprep.mubr.f32.mxu0 0.0
        %620 = vmatmul.mubr.f32.gmra.mxu0 %v553
        %v621 = vpop.f32.mrf.mxu0
        %v622 = vadd.f32 %v549, %v621
        %v623 = vpop.f32.mrf.mxu0
        %624 = vdwg.mxu0
        %v625 = vmul.f32 %v622, 0.17677669
        %v626 = vld [vmem:[#allocation2] sm:$0xff]
        %v627 = vld [vmem:[#allocation2 + $0x8] sm:$0xff]
        %v628 = vld [vmem:[#allocation2 + $0x10] sm:$0xff]
        %v629 = vld [vmem:[#allocation2 + $0x18] sm:$0xff]
        %v631 = vsel %vm551, %v625, 0
        %633 = vmatprep.subr.mxu0 0.0
        %634 = vmatpush1.msra.mxu0 0.0
        %635 = vmatprep.subr.mxu0 0.0
        %636 = vmatpush1.msra.mxu0 0.0
        %637 = vmatprep.subr.mxu0 0.0
        %638 = vmatpush1.msra.mxu0 0.0
        %639 = vmatprep.subr.mxu0 0.0
        %640 = vmatpush1.msra.mxu0 0.0
        %641 = vmatprep.subr.mxu0 0.0
        %642 = vmatpush1.msra.mxu0 0.0
        %643 = vmatprep.subr.mxu0 0.0
        %644 = vmatpush1.msra.mxu0 0.0
        %645 = vmatprep.subr.mxu0 0.0
        %646 = vmatpush1.msra.mxu0 0.0
        %647 = vmatprep.subr.mxu0 0.0
        %648 = vmatpush1.msra.mxu0 0.0
        %649 = vmatprep.subr.mxu0 0.0
        %650 = vmatpush1.msra.mxu0 0.0
        %651 = vmatprep.subr.mxu0 0.0
        %652 = vmatpush1.msra.mxu0 0.0
        %653 = vmatprep.subr.mxu0 0.0
        %654 = vmatpush1.msra.mxu0 0.0
        %655 = vmatprep.subr.mxu0 0.0
        %656 = vmatpush1.msra.mxu0 0.0
        %657 = vmatprep.subr.mxu0 0.0
        %658 = vmatpush1.msra.mxu0 %v629
        %659 = vmatprep.subr.mxu0 0.0
        %660 = vmatpush1.msra.mxu0 %v628
        %661 = vmatprep.subr.mxu0 0.0
        %662 = vmatpush1.msra.mxu0 %v627
        %663 = vmatprep.subr.mxu0 0.0
        %664 = vmatpush1.msra.mxu0 %v626
        %665 = vmatprep.subr.mxu0 0.0
        %666 = vmatpush2.msra.mxu0 0.0
        %667 = vmatprep.subr.mxu0 0.0
        %668 = vmatpush2.msra.mxu0 0.0
        %669 = vmatprep.subr.mxu0 0.0
        %670 = vmatpush2.msra.mxu0 0.0
        %671 = vmatprep.subr.mxu0 0.0
        %672 = vmatpush2.msra.mxu0 0.0
        %673 = vmatprep.subr.mxu0 0.0
        %674 = vmatpush2.msra.mxu0 0.0
        %675 = vmatprep.subr.mxu0 0.0
        %676 = vmatpush2.msra.mxu0 0.0
        %677 = vmatprep.subr.mxu0 0.0
        %678 = vmatpush2.msra.mxu0 0.0
        %679 = vmatprep.subr.mxu0 0.0
        %680 = vmatpush2.msra.mxu0 0.0
        %681 = vmatprep.subr.mxu0 0.0
        %682 = vmatpush2.msra.mxu0 0.0
        %683 = vmatprep.subr.mxu0 0.0
        %684 = vmatpush2.msra.mxu0 0.0
        %685 = vmatprep.subr.mxu0 0.0
        %686 = vmatpush2.msra.mxu0 0.0
        %687 = vmatprep.subr.mxu0 0.0
        %688 = vmatpush2.msra.mxu0 0.0
        %689 = vmatprep.subr.mxu0 0.0
        %690 = vmatpush2.msra.mxu0 0.0
        %691 = vmatprep.subr.mxu0 0.0
        %692 = vmatpush2.msra.mxu0 0.0
        %693 = vmatprep.subr.mxu0 0.0
        %694 = vmatpush2.msra.mxu0 0.0
        %695 = vmatprep.subr.mxu0 0.0
        %696 = vmatpush2.msra.mxu0 0.0
        %697 = vmatprep.mubr.f32.mxu0 0.0
        %698 = vmatmul.mubr.f32.gmra.mxu0 %v631
        %v699 = vpop.f32.mrf.mxu0
        %v700 = vadd.f32 0.0, %v699
        %v701 = vpop.f32.mrf.mxu0
        %702 = vdwg.mxu0
        %vm703 = vcmask 64512
        %v704 = vsel %vm703, %v700, -inf
        %705 = vmax.xlane.f32.xlu0 %v704
        %v706 = vpop.xlane.xlu0 %705
        %v707 = vsub.f32 %v700, %v706
        %v708 = vmul.f32 %v707, 1.442695
        %v709 = vpow.pop %v708
        %v710 = vsel %vm703, %v709, 0.0
        %711 = vadd.xlane.f32.xlu0 %v710
        %v712 = vpop.xlane.xlu0 %711
        %v713 = vrcp.pop %v712
        %v714 = vmul.f32 %v709, %v713
        %715 = vst.msk [vmem:[%s316] sm:$0xff] %vm703, %v714
        %v716 = vld [vmem:[#allocation3] sm:$0xff]
        %v718 = vsel %vm703, %v714, 0
        %720 = vmatprep.subr.mxu0 0.0
        %721 = vmatpush1.msra.mxu0 0.0
        %722 = vmatprep.subr.mxu0 0.0
        %723 = vmatpush1.msra.mxu0 0.0
        %724 = vmatprep.subr.mxu0 0.0
        %725 = vmatpush1.msra.mxu0 0.0
        %726 = vmatprep.subr.mxu0 0.0
        %727 = vmatpush1.msra.mxu0 0.0
        %728 = vmatprep.subr.mxu0 0.0
        %729 = vmatpush1.msra.mxu0 0.0
        %730 = vmatprep.subr.mxu0 0.0
        %731 = vmatpush1.msra.mxu0 0.0
        %732 = vmatprep.subr.mxu0 0.0
        %733 = vmatpush1.msra.mxu0 0.0
        %734 = vmatprep.subr.mxu0 0.0
        %735 = vmatpush1.msra.mxu0 0.0
        %736 = vmatprep.subr.mxu0 0.0
        %737 = vmatpush1.msra.mxu0 0.0
        %738 = vmatprep.subr.mxu0 0.0
        %739 = vmatpush1.msra.mxu0 0.0
        %740 = vmatprep.subr.mxu0 0.0
        %741 = vmatpush1.msra.mxu0 0.0
        %742 = vmatprep.subr.mxu0 0.0
        %743 = vmatpush1.msra.mxu0 0.0
        %744 = vmatprep.subr.mxu0 0.0
        %745 = vmatpush1.msra.mxu0 0.0
        %746 = vmatprep.subr.mxu0 0.0
        %747 = vmatpush1.msra.mxu0 0.0
        %748 = vmatprep.subr.mxu0 0.0
        %749 = vmatpush1.msra.mxu0 0.0
        %750 = vmatprep.subr.mxu0 0.0
        %751 = vmatpush1.msra.mxu0 %v716
        %752 = vmatprep.subr.mxu0 0.0
        %753 = vmatpush2.msra.mxu0 0.0
        %754 = vmatprep.subr.mxu0 0.0
        %755 = vmatpush2.msra.mxu0 0.0
        %756 = vmatprep.subr.mxu0 0.0
        %757 = vmatpush2.msra.mxu0 0.0
        %758 = vmatprep.subr.mxu0 0.0
        %759 = vmatpush2.msra.mxu0 0.0
        %760 = vmatprep.subr.mxu0 0.0
        %761 = vmatpush2.msra.mxu0 0.0
        %762 = vmatprep.subr.mxu0 0.0
        %763 = vmatpush2.msra.mxu0 0.0
        %764 = vmatprep.subr.mxu0 0.0
        %765 = vmatpush2.msra.mxu0 0.0
        %766 = vmatprep.subr.mxu0 0.0
        %767 = vmatpush2.msra.mxu0 0.0
        %768 = vmatprep.subr.mxu0 0.0
        %769 = vmatpush2.msra.mxu0 0.0
        %770 = vmatprep.subr.mxu0 0.0
        %771 = vmatpush2.msra.mxu0 0.0
        %772 = vmatprep.subr.mxu0 0.0
        %773 = vmatpush2.msra.mxu0 0.0
        %774 = vmatprep.subr.mxu0 0.0
        %775 = vmatpush2.msra.mxu0 0.0
        %776 = vmatprep.subr.mxu0 0.0
        %777 = vmatpush2.msra.mxu0 0.0
        %778 = vmatprep.subr.mxu0 0.0
        %779 = vmatpush2.msra.mxu0 0.0
        %780 = vmatprep.subr.mxu0 0.0
        %781 = vmatpush2.msra.mxu0 0.0
        %782 = vmatprep.subr.mxu0 0.0
        %783 = vmatpush2.msra.mxu0 0.0
        %784 = vmatprep.mubr.f32.mxu0 0.0
        %785 = vmatmul.mubr.f32.gmra.mxu0 %v718
        %v786 = vpop.f32.mrf.mxu0
        %v787 = vadd.f32 0.0, %v786
        %v788 = vpop.f32.mrf.mxu0
        %789 = vdwg.mxu0
        %790 = vst.msk [vmem:[%s323] sm:$0xff] %vm551, %v787
        %s791 = sand.u32 %s200, 1
        %s792 = scalar_lea.sflag [#allocation5], %s791
        %s793 = sand.u32 %s200, 1
        %s794 = smul.addr %s793, 8
        %s795 = scalar_lea.vmem [#allocation4], %s794
        %s796 = sand.u32 %s228, 1
        %s797 = scalar_lea.sflag [#allocation7], %s796
        %s798 = sand.u32 %s228, 1
        %s799 = smul.addr %s798, 8
        %s800 = scalar_lea.vmem [#allocation6], %s799
        // Predicated region
        $region53: #{feature_attention.1} parent=47 // pred_check
          %p801 = pneg %p210
        $region54: #{feature_attention.1} parent=47 // pred_check_branch
          %803 = sbr.rel (%p801) target = $region56
        $region55: #{feature_attention.1} parent=47 // pred_region
          %s805 = ssub.s32 128, 128
          %806 = vsyncadd %s792, %s805
          %s807 = sadd.s32 %s31, %s30
          %s808 = smul.addr %s807, 128
          %s809 = scalar_lea.hbm %s7, %s808
          %s811 = sshll.u32 %s795, 4
          %s812 = int_to_ptr.vmem [resolvable:$true] %s811
          %814 = dma.vmem_to_hbm [thread:$0]  %s812, 128, %s809, %s792
        $region56: #{feature_attention.1} parent=47 // pred_fallthru
          _
        // Predicated region
        $region57: #{feature_attention.1} parent=47 // pred_check
          %p815 = pneg %p238
        $region58: #{feature_attention.1} parent=47 // pred_check_branch
          %817 = sbr.rel (%p815) target = $region60
        $region59: #{feature_attention.1} parent=47 // pred_region
          %s819 = ssub.s32 128, 128
          %820 = vsyncadd %s797, %s819
          %s821 = sadd.s32 %s31, %s30
          %s822 = smul.addr %s821, 128
          %s823 = scalar_lea.hbm %s8, %s822
          %s825 = sshll.u32 %s800, 4
          %s826 = int_to_ptr.vmem [resolvable:$true] %s825
          %828 = dma.vmem_to_hbm [thread:$0]  %s826, 128, %s823, %s797
        $region60: #{feature_attention.1} parent=47 // pred_fallthru
          _
      $region48: #{feature_attention.1} parent=5 // pred_fallthru
        _
      %p829 = scmp.le.s32.totalorder 2, %s21
      // Predicated region
      $region61: #{feature_attention.1} parent=5 // pred_check
        %p830 = pneg %p829
      $region62: #{feature_attention.1} parent=5 // pred_check_branch
        %832 = sbr.rel (%p830) target = $region64
      $region63: #{feature_attention.1} parent=5 // pred_region
        %s833 = ssub.s32 %s21, 2
        // Predicated region
        $region65: #{feature_attention.1} parent=63 // pred_check
          %p834 = pneg %p216
        $region66: #{feature_attention.1} parent=63 // pred_check_branch
          %836 = sbr.rel (%p834) target = $region68
        $region67: #{feature_attention.1} parent=63 // pred_region
          %s837 = sand.u32 %s201, 1
          %s838 = scalar_lea.sflag [#allocation5], %s837
          %s839 = sand.u32 %s201, 1
          %s840 = smul.addr %s839, 8
          %s841 = scalar_lea.vmem [#allocation4], %s840
          %842 = dma.done %s838, 128
        $region68: #{feature_attention.1} parent=63 // pred_fallthru
          _
        // Predicated region
        $region69: #{feature_attention.1} parent=63 // pred_check
          %p843 = pneg %p244
        $region70: #{feature_attention.1} parent=63 // pred_check_branch
          %845 = sbr.rel (%p843) target = $region72
        $region71: #{feature_attention.1} parent=63 // pred_region
          %s846 = sand.u32 %s229, 1
          %s847 = scalar_lea.sflag [#allocation7], %s846
          %s848 = sand.u32 %s229, 1
          %s849 = smul.addr %s848, 8
          %s850 = scalar_lea.vmem [#allocation6], %s849
          %851 = dma.done %s847, 128
        $region72: #{feature_attention.1} parent=63 // pred_fallthru
          _
      $region64: #{feature_attention.1} parent=5 // pred_fallthru
        _
    $region6: #{feature_attention.1} parent=1 // loop_footer
      %s25 = sadd.s32 1, %s21
    $region7: #{feature_attention.1} parent=1 // loop_footer_branch
      %20 = sbr.rel target = $region3
    $region8: #{feature_attention.1} parent=1 // loop_exit
      _
    %852 = vsyncpa [#allocation5], 1
    %s853 = scalar_lea.sflag [#allocation5], 1
    %854 = vsyncpa %s853, 1
    %855 = vsyncpa [#allocation7], 1
    %s856 = scalar_lea.sflag [#allocation7], 1
    %857 = vsyncpa %s856, 1

</llo_original>
